<compile_context>
chip_gen: v6e
topology: v6e:2x2x1
jax: 0.10.0
libtpu: 0.0.40
codegen_flags: <defaults>
</compile_context>

<pallas_src>
import functools

import numpy as np
import jax
import jax.numpy as jnp
from jax import lax
from jax.experimental import pallas as pl
from jax.experimental.pallas import tpu as pltpu


MXU_DTYPE = jnp.bfloat16   # bf16 MXU operands; set to jnp.float32 for bit-exact mode


def _round_up(n, m):
    return ((n + m - 1) // m) * m


def make_layout(input_dim, embedding_dim):
    """Row offsets of each tensor inside the packed parameter blob.

    Weights are stored in torch [out_features, in_features] orientation (the
    kernel runs the net transposed), biases as (out, 1) columns.  Every segment
    starts on an 8-row boundary so in-kernel slices are sublane-aligned; the
    blob is zero-padded to a 128-lane width."""
    segs = [
        ("we", embedding_dim, input_dim),   # embedding weight  [out, in]
        ("be", embedding_dim, 1),           # embedding bias    (out, 1)
        ("w1", 64, embedding_dim),          # mlp linear 1
        ("b1", 64, 1),
        ("w2", 32, 64),                     # mlp linear 2
        ("b2", 32, 1),
        ("wf", 1, 32),                      # fc weight (out=1, in=32)
        ("bf", 1, 1),                       # fc bias
    ]
    layout, off = {}, 0
    for name, r, c in segs:
        layout[name] = (off, r, c)
        off += _round_up(r, 8)
    cols = _round_up(max(c for _, _, c in segs), 128)
    return layout, off, cols


def pack_params(params, layout, total_rows, cols):
    blob = np.zeros((total_rows, cols), np.float32)
    for name, (off, r, c) in layout.items():
        blob[off:off + r, :c] = np.asarray(params[name], np.float32).reshape(r, c)
    return jnp.asarray(blob)


def classification_kernel(x_ref, p_ref, o_ref, *, layout):
    def weight(name):                       # bf16 MXU operand
        off, r, c = layout[name]
        return p_ref[pl.ds(off, r), pl.ds(0, c)].astype(MXU_DTYPE)

    def bias(name):                         # f32 (out, 1) column, lane-broadcast on add
        off, r, c = layout[name]
        return p_ref[pl.ds(off, r), pl.ds(0, c)]

    x = x_ref[...].astype(MXU_DTYPE)                                      # (TB, D_in)

    # embedding, computed transposed: W_e (E,D) contracted with x (TB,D) on D -> (E,TB)
    h = lax.dot_general(weight("we"), x, (((1,), (1,)), ((), ())),
                        preferred_element_type=jnp.float32) + bias("be")
    # mlp: Linear -> ReLU -> Linear -> ReLU, all with batch in lanes
    h = jnp.dot(weight("w1"), h.astype(MXU_DTYPE),
                preferred_element_type=jnp.float32) + bias("b1")          # (64, TB)
    h = jnp.maximum(h, 0.0)
    h = jnp.dot(weight("w2"), h.astype(MXU_DTYPE),
                preferred_element_type=jnp.float32) + bias("b2")          # (32, TB)
    h = jnp.maximum(h, 0.0)

    # fc: (1,32) @ (32,TB) -> lane-dense (1,TB) logits row
    logits_t = jnp.dot(weight("wf"), h.astype(MXU_DTYPE),
                       preferred_element_type=jnp.float32) + bias("bf")
    # sigmoid: exp rides the EUP slot, approx reciprocal does too (VALU stays free)
    o_ref[...] = pl.reciprocal(1.0 + jnp.exp(-logits_t), approx=True)


def _choose_tile(B):
    CAP = 4096                                   # a few MiB of VMEM per step at most
    if B <= CAP:
        return B                                 # single grid step (serial loop on 1-TC chips)
    # Large B: 128-multiple tiles (lane-dense output blocks) and >=2 grid steps
    # so the "parallel" batch axis can shard across v7x's two TensorCores.
    return min(CAP, _round_up(pl.cdiv(B, 2), 128))


def classification_forward(x, blob, *, layout):
    B, d_in = x.shape
    TB = _choose_tile(B)
    grid = (pl.cdiv(B, TB),)
    kernel = functools.partial(classification_kernel, layout=layout)
    out_t = pl.pallas_call(
        kernel,
        out_shape=jax.ShapeDtypeStruct((1, B), jnp.float32),
        grid=grid,
        in_specs=[
            pl.BlockSpec((TB, d_in), lambda i: (i, 0)),       # batch-tiled x
            pl.BlockSpec(blob.shape, lambda i: (0, 0)),       # constant index -> DMA'd once
        ],
        out_specs=pl.BlockSpec((1, TB), lambda i: (0, i)),    # lane-dense output row
        compiler_params=pltpu.CompilerParams(
            dimension_semantics=("parallel",)),               # batch shards across v7x's 2 TCs
    )(x, blob)
    return out_t.reshape(B, 1)                                # metadata-only fixup, matches nn.Module


def init_params(key, input_dim, embedding_dim):
    """Deterministic nn.Linear-style init, torch [out_features, in_features] layout."""
    def linear(k, fan_in, fan_out):
        k1, k2 = jax.random.split(k)
        bound = 1.0 / np.sqrt(fan_in)
        w = jax.random.uniform(k1, (fan_out, fan_in), jnp.float32, -bound, bound)
        b = jax.random.uniform(k2, (fan_out,), jnp.float32, -bound, bound)
        return w, b

    keys = jax.random.split(key, 4)
    we, be = linear(keys[0], input_dim, embedding_dim)
    w1, b1 = linear(keys[1], embedding_dim, 64)
    w2, b2 = linear(keys[2], 64, 32)
    wf, bf = linear(keys[3], 32, 1)
    return dict(we=we, be=be, w1=w1, b1=b1, w2=w2, b2=b2, wf=wf, bf=bf)


def reference_forward(x, p):
    emb = x @ p["we"].T + p["be"]
    h = jnp.maximum(emb @ p["w1"].T + p["b1"], 0.0)
    h = jnp.maximum(h @ p["w2"].T + p["b2"], 0.0)
    return jax.nn.sigmoid(h @ p["wf"].T + p["bf"])


if __name__ == "__main__":
    B, INPUT_DIM, EMBEDDING_DIM = 8, 16, 64
    key = jax.random.PRNGKey(0)
    kx, kp = jax.random.split(key)
    x = jax.random.normal(kx, (B, INPUT_DIM), dtype=jnp.float32)
    params = init_params(kp, INPUT_DIM, EMBEDDING_DIM)

    layout, total_rows, cols = make_layout(INPUT_DIM, EMBEDDING_DIM)
    blob = pack_params(params, layout, total_rows, cols)   # one-time host-side pack

    fwd = jax.jit(functools.partial(classification_forward, layout=layout))
    out = jax.block_until_ready(fwd(x, blob))

    ref = reference_forward(x, params)
    assert out.shape == (B, 1), out.shape
    # bf16 MXU operands + approx reciprocal => relaxed tolerance vs the f32 reference
    assert jnp.max(jnp.abs(out - ref.reshape(B, 1))) < 2e-2, (out, ref)
    print("KERNEL_OK")
</pallas_src>

<mosaic_0001>
module attributes {stable_mosaic.version = 11 : i64} {
  func.func @classification_kernel(%arg0: i32, %arg1: memref<8x16xf32, #tpu.memory_space<vmem>>, %arg2: memref<336x128xf32, #tpu.memory_space<vmem>>, %arg3: memref<1x8xf32, #tpu.memory_space<vmem>>) attributes {dimension_semantics = [#tpu.dimension_semantics<parallel>], iteration_bounds = array<i64: 1>, scalar_prefetch = 0 : i64, scratch_operands = 0 : i64, tpu.core_type = #tpu.core_type<tc>, window_params = [{transform_indices = @transform_0, window_bounds = array<i64: 8, 16>}, {pipeline_mode = #tpu.pipeline_mode<synchronous>, transform_indices = @transform_1, window_bounds = array<i64: 336, 128>}, {transform_indices = @transform_2, window_bounds = array<i64: 1, 8>}]} {
    %c0 = arith.constant 0 : index
    %c0_0 = arith.constant 0 : index
    %0 = vector.load %arg1[%c0, %c0_0] : memref<8x16xf32, #tpu.memory_space<vmem>>, vector<8x16xf32>
    %1 = arith.truncf %0 : vector<8x16xf32> to vector<8x16xbf16>
    %c0_1 = arith.constant 0 : index
    %c0_2 = arith.constant 0 : index
    %2 = vector.load %arg2[%c0_1, %c0_2] : memref<336x128xf32, #tpu.memory_space<vmem>>, vector<64x16xf32>
    %3 = arith.truncf %2 : vector<64x16xf32> to vector<64x16xbf16>
    %cst = arith.constant dense<0.000000e+00> : vector<64x8xf32>
    %4 = tpu.matmul %3, %1, %cst {dimension_numbers = #tpu.dot_dimension_numbers<[1], [1], [0], [0], [0, 0, 1, 0], [], []>} : vector<64x16xbf16>, vector<8x16xbf16>, vector<64x8xf32> -> vector<64x8xf32>
    %c64 = arith.constant 64 : index
    %c0_3 = arith.constant 0 : index
    %5 = vector.load %arg2[%c64, %c0_3] : memref<336x128xf32, #tpu.memory_space<vmem>>, vector<64x1xf32>
    %6 = vector.broadcast %5 : vector<64x1xf32> to vector<64x8xf32>
    %7 = arith.addf %4, %6 : vector<64x8xf32>
    %c128 = arith.constant 128 : index
    %c0_4 = arith.constant 0 : index
    %8 = vector.load %arg2[%c128, %c0_4] : memref<336x128xf32, #tpu.memory_space<vmem>>, vector<64x64xf32>
    %9 = arith.truncf %8 : vector<64x64xf32> to vector<64x64xbf16>
    %10 = arith.truncf %7 : vector<64x8xf32> to vector<64x8xbf16>
    %cst_5 = arith.constant dense<0.000000e+00> : vector<64x8xf32>
    %11 = tpu.matmul %9, %10, %cst_5 {dimension_numbers = #tpu.dot_dimension_numbers<[1], [0], [0], [1], [0, 0, 1, 1], [], []>} : vector<64x64xbf16>, vector<64x8xbf16>, vector<64x8xf32> -> vector<64x8xf32>
    %c192 = arith.constant 192 : index
    %c0_6 = arith.constant 0 : index
    %12 = vector.load %arg2[%c192, %c0_6] : memref<336x128xf32, #tpu.memory_space<vmem>>, vector<64x1xf32>
    %13 = vector.broadcast %12 : vector<64x1xf32> to vector<64x8xf32>
    %14 = arith.addf %11, %13 : vector<64x8xf32>
    %cst_7 = arith.constant 0.000000e+00 : f32
    %15 = vector.broadcast %cst_7 : f32 to vector<64x8xf32>
    %16 = arith.maximumf %14, %15 : vector<64x8xf32>
    %c256 = arith.constant 256 : index
    %c0_8 = arith.constant 0 : index
    %17 = vector.load %arg2[%c256, %c0_8] : memref<336x128xf32, #tpu.memory_space<vmem>>, vector<32x64xf32>
    %18 = arith.truncf %17 : vector<32x64xf32> to vector<32x64xbf16>
    %19 = arith.truncf %16 : vector<64x8xf32> to vector<64x8xbf16>
    %cst_9 = arith.constant dense<0.000000e+00> : vector<32x8xf32>
    %20 = tpu.matmul %18, %19, %cst_9 {dimension_numbers = #tpu.dot_dimension_numbers<[1], [0], [0], [1], [0, 0, 1, 1], [], []>} : vector<32x64xbf16>, vector<64x8xbf16>, vector<32x8xf32> -> vector<32x8xf32>
    %c288 = arith.constant 288 : index
    %c0_10 = arith.constant 0 : index
    %21 = vector.load %arg2[%c288, %c0_10] : memref<336x128xf32, #tpu.memory_space<vmem>>, vector<32x1xf32>
    %22 = vector.broadcast %21 : vector<32x1xf32> to vector<32x8xf32>
    %23 = arith.addf %20, %22 : vector<32x8xf32>
    %cst_11 = arith.constant 0.000000e+00 : f32
    %24 = vector.broadcast %cst_11 : f32 to vector<32x8xf32>
    %25 = arith.maximumf %23, %24 : vector<32x8xf32>
    %c320 = arith.constant 320 : index
    %c0_12 = arith.constant 0 : index
    %26 = vector.load %arg2[%c320, %c0_12] : memref<336x128xf32, #tpu.memory_space<vmem>>, vector<1x32xf32>
    %27 = arith.truncf %26 : vector<1x32xf32> to vector<1x32xbf16>
    %28 = arith.truncf %25 : vector<32x8xf32> to vector<32x8xbf16>
    %cst_13 = arith.constant dense<0.000000e+00> : vector<1x8xf32>
    %29 = tpu.matmul %27, %28, %cst_13 {dimension_numbers = #tpu.dot_dimension_numbers<[1], [0], [0], [1], [0, 0, 1, 1], [], []>} : vector<1x32xbf16>, vector<32x8xbf16>, vector<1x8xf32> -> vector<1x8xf32>
    %c328 = arith.constant 328 : index
    %c0_14 = arith.constant 0 : index
    %30 = vector.load %arg2[%c328, %c0_14] : memref<336x128xf32, #tpu.memory_space<vmem>>, vector<1x1xf32>
    %31 = vector.broadcast %30 : vector<1x1xf32> to vector<1x8xf32>
    %32 = arith.addf %29, %31 : vector<1x8xf32>
    %cst_15 = arith.constant 0.000000e+00 : f32
    %33 = vector.broadcast %cst_15 : f32 to vector<1x8xf32>
    %34 = arith.subf %33, %32 : vector<1x8xf32>
    %35 = math.exp %34 : vector<1x8xf32>
    %cst_16 = arith.constant 1.000000e+00 : f32
    %36 = vector.broadcast %cst_16 : f32 to vector<1x8xf32>
    %37 = arith.addf %36, %35 : vector<1x8xf32>
    %38 = tpu.reciprocal %37 {approx = true} : vector<1x8xf32> -> vector<1x8xf32>
    %c0_17 = arith.constant 0 : index
    %c0_18 = arith.constant 0 : index
    %39 = vector.load %arg3[%c0_17, %c0_18] : memref<1x8xf32, #tpu.memory_space<vmem>>, vector<1x8xf32>
    tpu.vector_store %arg3[%c0_17, %c0_18], %38 {strides = array<i32>} : memref<1x8xf32, #tpu.memory_space<vmem>>, vector<1x8xf32>,
    return
  }
  func.func @transform_0(%arg0: i32) -> (i32, i32) {
    %c0_i32 = arith.constant 0 : i32
    %c0_i32_0 = arith.constant 0 : i32
    return %arg0, %c0_i32 : i32, i32
  }
  func.func @transform_1(%arg0: i32) -> (i32, i32) {
    %c0_i32 = arith.constant 0 : i32
    %c0_i32_0 = arith.constant 0 : i32
    %c0_i32_1 = arith.constant 0 : i32
    return %c0_i32, %c0_i32_0 : i32, i32
  }
  func.func @transform_2(%arg0: i32) -> (i32, i32) {
    %c0_i32 = arith.constant 0 : i32
    %c0_i32_0 = arith.constant 0 : i32
    return %c0_i32, %arg0 : i32, i32
  }
}

</mosaic_0001>

<llo_original>
// kernel: classification_forward.1
$region0: #{classification_forward.1}
  #allocation0 [shape = 'u32[]', space=smem, size = 0x4, offset = 0x4, fixed_abs, tag = 'smem constant byte address 0x4 - core index']
  #allocation1 [shape = 'u32[144,128]{1,0:T(1,128)}', space=vmem, size = 0x12000, scoped, tag = 'internal scratch']
  %s0 = inlined_call_operand.hbm [shape: f32[8,16], index: 0, kind: input, shape index: {}]
  %s1 = inlined_call_operand.hbm [shape: f32[336,128], index: 1, kind: input, shape index: {}]
  %s2 = inlined_call_operand.hbm [shape: f32[1,8], index: 2, kind: output, shape index: {}]
  %s3 = sld [smem:[#allocation0]]
  $region26: #{classification_forward.1} parent=0
    _
  %s5 = ssub.s32 1, %s3
  %s6 = scalar_select 0, %s5, %s3
  $region1: #{classification_forward.1} parent=0
    #allocation2 [shape = 'u8[4096]{0}', space=vmem, size = 0x1000, scoped, tag = 'input window, operand 0, single buffered']
    #allocation3 [shape = 's32[1]{0}', space=sflag, size = 0x4, scoped, tag = 'scoped memory for classification_forward.1']
    #allocation4 [shape = 's32[1]{0}', space=sflag, size = 0x4, scoped, tag = 'scoped memory for classification_forward.1']
    #allocation5 [shape = 'u8[172032]{0}', space=vmem, size = 0x2a000, scoped, tag = 'input window, operand 1, single buffered']
    #allocation6 [shape = 's32[1]{0}', space=sflag, size = 0x4, scoped, tag = 'scoped memory for classification_forward.1']
    #allocation7 [shape = 'u8[512]{0}', space=vmem, size = 0x400, scoped, tag = 'output window, operand 0, single buffered']
    %7 = vsyncpa [#allocation3], 0
    %8 = vsyncpa [#allocation6], 0
    %9 = vsyncpa [#allocation4], 0
    // Predicated region
    $region2: #{classification_forward.1} parent=1 // pred_check
      _
    $region3: #{classification_forward.1} parent=1 // pred_check_branch
      %11 = sbr.rel (0) target = $region5
    $region4: #{classification_forward.1} parent=1 // pred_region
      %s13 = ssub.s32 128, 128
      %14 = vsyncadd [#allocation3], %s13
      %s16 = sshll.u32 [#allocation2], 4
      %s17 = int_to_ptr.vmem [resolvable:$true] %s16
      %19 = dma.hbm_to_vmem [thread:$0]  %s0, 128, %s17, [#allocation3]
    $region5: #{classification_forward.1} parent=1 // pred_fallthru
      _
    // Predicated region
    $region6: #{classification_forward.1} parent=1 // pred_check
      _
    $region7: #{classification_forward.1} parent=1 // pred_check_branch
      %21 = sbr.rel (0) target = $region9
    $region8: #{classification_forward.1} parent=1 // pred_region
      %s23 = ssub.s32 5376, 5376
      %24 = vsyncadd [#allocation6], %s23
      %s25 = sshll.u32 [#allocation5], 4
      %s26 = int_to_ptr.vmem [resolvable:$true] %s25
      %31 = dma.hbm_to_vmem [thread:$0]  %s1, 5376, %s26, [#allocation6], 128, 128, 8
    $region9: #{classification_forward.1} parent=1 // pred_fallthru
      _
    // Predicated region
    $region10: #{classification_forward.1} parent=1 // pred_check
      _
    $region11: #{classification_forward.1} parent=1 // pred_check_branch
      %33 = sbr.rel (0) target = $region13
    $region12: #{classification_forward.1} parent=1 // pred_region
      %34 = dma.done [#allocation3], 128
    $region13: #{classification_forward.1} parent=1 // pred_fallthru
      _
    // Predicated region
    $region14: #{classification_forward.1} parent=1 // pred_check
      _
    $region15: #{classification_forward.1} parent=1 // pred_check_branch
      %36 = sbr.rel (0) target = $region17
    $region16: #{classification_forward.1} parent=1 // pred_region
      %37 = dma.done [#allocation6], 5376
    $region17: #{classification_forward.1} parent=1 // pred_fallthru
      _
    %v39 = vld [vmem:[#allocation2] sm:$0xff]
    %v40 = vpack.c.bf16 %v39, %v39
    %v41 = vld [vmem:[#allocation5] sm:$0xff]
    %v42 = vld [vmem:[#allocation5 + $0x8] sm:$0xff]
    %v43 = vld [vmem:[#allocation5 + $0x10] sm:$0xff]
    %v44 = vld [vmem:[#allocation5 + $0x18] sm:$0xff]
    %v45 = vld [vmem:[#allocation5 + $0x20] sm:$0xff]
    %v46 = vld [vmem:[#allocation5 + $0x28] sm:$0xff]
    %v47 = vld [vmem:[#allocation5 + $0x30] sm:$0xff]
    %v48 = vld [vmem:[#allocation5 + $0x38] sm:$0xff]
    %v49 = vpack.c.bf16 %v42, %v41
    %v50 = vpack.c.bf16 %v44, %v43
    %v51 = vpack.c.bf16 %v46, %v45
    %v52 = vpack.c.bf16 %v48, %v47
    %v53 = vld [vmem:[#allocation5 + $0x40] sm:$0xff]
    %v54 = vld [vmem:[#allocation5 + $0x48] sm:$0xff]
    %v55 = vld [vmem:[#allocation5 + $0x50] sm:$0xff]
    %v56 = vld [vmem:[#allocation5 + $0x58] sm:$0xff]
    %v57 = vld [vmem:[#allocation5 + $0x60] sm:$0xff]
    %v58 = vld [vmem:[#allocation5 + $0x68] sm:$0xff]
    %v59 = vld [vmem:[#allocation5 + $0x70] sm:$0xff]
    %v60 = vld [vmem:[#allocation5 + $0x78] sm:$0xff]
    %62 = vset.pattern.permute.xlu0 0
    %63 = vperm.xlu0 %62, %v53
    %v64 = vpop.permute.xlu0 %63
    %67 = vset.pattern.permute.xlu0 0
    %68 = vperm.xlu0 %67, %v54
    %v69 = vpop.permute.xlu0 %68
    %72 = vset.pattern.permute.xlu0 0
    %73 = vperm.xlu0 %72, %v55
    %v74 = vpop.permute.xlu0 %73
    %77 = vset.pattern.permute.xlu0 0
    %78 = vperm.xlu0 %77, %v56
    %v79 = vpop.permute.xlu0 %78
    %82 = vset.pattern.permute.xlu0 0
    %83 = vperm.xlu0 %82, %v57
    %v84 = vpop.permute.xlu0 %83
    %87 = vset.pattern.permute.xlu0 0
    %88 = vperm.xlu0 %87, %v58
    %v89 = vpop.permute.xlu0 %88
    %92 = vset.pattern.permute.xlu0 0
    %93 = vperm.xlu0 %92, %v59
    %v94 = vpop.permute.xlu0 %93
    %97 = vset.pattern.permute.xlu0 0
    %98 = vperm.xlu0 %97, %v60
    %v99 = vpop.permute.xlu0 %98
    %vm101 = vcmask 130048
    %v103 = vsel %vm101, %v49, 0
    %v106 = vsel %vm101, %v50, 0
    %v109 = vsel %vm101, %v51, 0
    %v112 = vsel %vm101, %v52, 0
    %v115 = vsel %vm101, %v40, 0
    %117 = vmatprep.subr.bf16.mxu0 0
    %118 = vmatpush1.bf16.xpose.msra.mxu0 0
    %119 = vmatprep.subr.bf16.mxu0 0
    %120 = vmatpush1.bf16.xpose.msra.mxu0 0
    %121 = vmatprep.subr.bf16.mxu0 0
    %122 = vmatpush1.bf16.xpose.msra.mxu0 0
    %123 = vmatprep.subr.bf16.mxu0 0
    %124 = vmatpush1.bf16.xpose.msra.mxu0 0
    %125 = vmatprep.subr.bf16.mxu0 0
    %126 = vmatpush1.bf16.xpose.msra.mxu0 0
    %127 = vmatprep.subr.bf16.mxu0 0
    %128 = vmatpush1.bf16.xpose.msra.mxu0 0
    %129 = vmatprep.subr.bf16.mxu0 0
    %130 = vmatpush1.bf16.xpose.msra.mxu0 0
    %131 = vmatprep.subr.bf16.mxu0 0
    %132 = vmatpush1.bf16.xpose.msra.mxu0 %v115
    %133 = vmatprep.subr.bf16.mxu0 0
    %134 = vmatpush2.bf16.xpose.msra.mxu0 0
    %135 = vmatprep.subr.bf16.mxu0 0
    %136 = vmatpush2.bf16.xpose.msra.mxu0 0
    %137 = vmatprep.subr.bf16.mxu0 0
    %138 = vmatpush2.bf16.xpose.msra.mxu0 0
    %139 = vmatprep.subr.bf16.mxu0 0
    %140 = vmatpush2.bf16.xpose.msra.mxu0 0
    %141 = vmatprep.subr.bf16.mxu0 0
    %142 = vmatpush2.bf16.xpose.msra.mxu0 0
    %143 = vmatprep.subr.bf16.mxu0 0
    %144 = vmatpush2.bf16.xpose.msra.mxu0 0
    %145 = vmatprep.subr.bf16.mxu0 0
    %146 = vmatpush2.bf16.xpose.msra.mxu0 0
    %147 = vmatprep.subr.bf16.mxu0 0
    %148 = vmatpush2.bf16.xpose.msra.mxu0 0
    %149 = vmatprep.mubr.bf16.mxu0 0
    %150 = vmatmul.mubr.bf16.gmra.mxu0 %v103
    %v151 = vpop.f32.mrf.mxu0
    %v152 = vadd.f32 %v64, %v151
    %v153 = vpop.f32.mrf.mxu0
    %v154 = vpop.f32.mrf.mxu0
    %v155 = vadd.f32 %v69, %v154
    %v156 = vpop.f32.mrf.mxu0
    %157 = vmatprep.mubr.bf16.mxu0 0
    %158 = vmatmul.mubr.bf16.gmra.mxu0 %v106
    %v159 = vpop.f32.mrf.mxu0
    %v160 = vadd.f32 %v74, %v159
    %v161 = vpop.f32.mrf.mxu0
    %v162 = vpop.f32.mrf.mxu0
    %v163 = vadd.f32 %v79, %v162
    %v164 = vpop.f32.mrf.mxu0
    %165 = vmatprep.mubr.bf16.mxu0 0
    %166 = vmatmul.mubr.bf16.gmra.mxu0 %v109
    %v167 = vpop.f32.mrf.mxu0
    %v168 = vadd.f32 %v84, %v167
    %v169 = vpop.f32.mrf.mxu0
    %v170 = vpop.f32.mrf.mxu0
    %v171 = vadd.f32 %v89, %v170
    %v172 = vpop.f32.mrf.mxu0
    %173 = vmatprep.mubr.bf16.mxu0 0
    %174 = vmatmul.mubr.bf16.gmra.mxu0 %v112
    %v175 = vpop.f32.mrf.mxu0
    %v176 = vadd.f32 %v94, %v175
    %v177 = vpop.f32.mrf.mxu0
    %v178 = vpop.f32.mrf.mxu0
    %v179 = vadd.f32 %v99, %v178
    %v180 = vpop.f32.mrf.mxu0
    %181 = vdwg.mxu0
    %v182 = vld [vmem:[#allocation5 + $0x80] sm:$0xff]
    %v183 = vld [vmem:[#allocation5 + $0x88] sm:$0xff]
    %v184 = vld [vmem:[#allocation5 + $0x90] sm:$0xff]
    %v185 = vld [vmem:[#allocation5 + $0x98] sm:$0xff]
    %v186 = vld [vmem:[#allocation5 + $0xa0] sm:$0xff]
    %v187 = vld [vmem:[#allocation5 + $0xa8] sm:$0xff]
    %v188 = vld [vmem:[#allocation5 + $0xb0] sm:$0xff]
    %v189 = vld [vmem:[#allocation5 + $0xb8] sm:$0xff]
    %v190 = vpack.c.bf16 %v183, %v182
    %v191 = vpack.c.bf16 %v185, %v184
    %v192 = vpack.c.bf16 %v187, %v186
    %v193 = vpack.c.bf16 %v189, %v188
    %v194 = vpack.c.bf16 %v155, %v152
    %v195 = vpack.c.bf16 %v163, %v160
    %v196 = vpack.c.bf16 %v171, %v168
    %v197 = vpack.c.bf16 %v179, %v176
    %v198 = vld [vmem:[#allocation5 + $0xc0] sm:$0xff]
    %v199 = vld [vmem:[#allocation5 + $0xc8] sm:$0xff]
    %v200 = vld [vmem:[#allocation5 + $0xd0] sm:$0xff]
    %v201 = vld [vmem:[#allocation5 + $0xd8] sm:$0xff]
    %v202 = vld [vmem:[#allocation5 + $0xe0] sm:$0xff]
    %v203 = vld [vmem:[#allocation5 + $0xe8] sm:$0xff]
    %v204 = vld [vmem:[#allocation5 + $0xf0] sm:$0xff]
    %v205 = vld [vmem:[#allocation5 + $0xf8] sm:$0xff]
    %207 = vset.pattern.permute.xlu0 0
    %208 = vperm.xlu0 %207, %v198
    %v209 = vpop.permute.xlu0 %208
    %212 = vset.pattern.permute.xlu0 0
    %213 = vperm.xlu0 %212, %v199
    %v214 = vpop.permute.xlu0 %213
    %217 = vset.pattern.permute.xlu0 0
    %218 = vperm.xlu0 %217, %v200
    %v219 = vpop.permute.xlu0 %218
    %222 = vset.pattern.permute.xlu0 0
    %223 = vperm.xlu0 %222, %v201
    %v224 = vpop.permute.xlu0 %223
    %227 = vset.pattern.permute.xlu0 0
    %228 = vperm.xlu0 %227, %v202
    %v229 = vpop.permute.xlu0 %228
    %232 = vset.pattern.permute.xlu0 0
    %233 = vperm.xlu0 %232, %v203
    %v234 = vpop.permute.xlu0 %233
    %237 = vset.pattern.permute.xlu0 0
    %238 = vperm.xlu0 %237, %v204
    %v239 = vpop.permute.xlu0 %238
    %242 = vset.pattern.permute.xlu0 0
    %243 = vperm.xlu0 %242, %v205
    %v244 = vpop.permute.xlu0 %243
    %vm246 = vcmask 523264
    %v248 = vsel %vm246, %v190, 0
    %v251 = vsel %vm246, %v191, 0
    %v254 = vsel %vm246, %v192, 0
    %v257 = vsel %vm246, %v193, 0
    %259 = vmatprep.subr.bf16.mxu0 0
    %260 = vmatpush1.bf16.msra.mxu0 0
    %261 = vmatprep.subr.bf16.mxu0 0
    %262 = vmatpush1.bf16.msra.mxu0 0
    %263 = vmatprep.subr.bf16.mxu0 0
    %264 = vmatpush1.bf16.msra.mxu0 0
    %265 = vmatprep.subr.bf16.mxu0 0
    %266 = vmatpush1.bf16.msra.mxu0 0
    %267 = vmatprep.subr.bf16.mxu0 0
    %268 = vmatpush1.bf16.msra.mxu0 %v197
    %269 = vmatprep.subr.bf16.mxu0 0
    %270 = vmatpush1.bf16.msra.mxu0 %v196
    %271 = vmatprep.subr.bf16.mxu0 0
    %272 = vmatpush1.bf16.msra.mxu0 %v195
    %273 = vmatprep.subr.bf16.mxu0 0
    %274 = vmatpush1.bf16.msra.mxu0 %v194
    %275 = vmatprep.subr.bf16.mxu0 0
    %276 = vmatpush2.bf16.msra.mxu0 0
    %277 = vmatprep.subr.bf16.mxu0 0
    %278 = vmatpush2.bf16.msra.mxu0 0
    %279 = vmatprep.subr.bf16.mxu0 0
    %280 = vmatpush2.bf16.msra.mxu0 0
    %281 = vmatprep.subr.bf16.mxu0 0
    %282 = vmatpush2.bf16.msra.mxu0 0
    %283 = vmatprep.subr.bf16.mxu0 0
    %284 = vmatpush2.bf16.msra.mxu0 0
    %285 = vmatprep.subr.bf16.mxu0 0
    %286 = vmatpush2.bf16.msra.mxu0 0
    %287 = vmatprep.subr.bf16.mxu0 0
    %288 = vmatpush2.bf16.msra.mxu0 0
    %289 = vmatprep.subr.bf16.mxu0 0
    %290 = vmatpush2.bf16.msra.mxu0 0
    %291 = vmatprep.mubr.bf16.mxu0 0
    %292 = vmatmul.mubr.bf16.gmra.mxu0 %v248
    %v293 = vpop.f32.mrf.mxu0
    %v294 = vadd.f32 %v209, %v293
    %v295 = vpop.f32.mrf.mxu0
    %v296 = vpop.f32.mrf.mxu0
    %v297 = vadd.f32 %v214, %v296
    %v298 = vpop.f32.mrf.mxu0
    %299 = vmatprep.mubr.bf16.mxu0 0
    %300 = vmatmul.mubr.bf16.gmra.mxu0 %v251
    %v301 = vpop.f32.mrf.mxu0
    %v302 = vadd.f32 %v219, %v301
    %v303 = vpop.f32.mrf.mxu0
    %v304 = vpop.f32.mrf.mxu0
    %v305 = vadd.f32 %v224, %v304
    %v306 = vpop.f32.mrf.mxu0
    %307 = vmatprep.mubr.bf16.mxu0 0
    %308 = vmatmul.mubr.bf16.gmra.mxu0 %v254
    %v309 = vpop.f32.mrf.mxu0
    %v310 = vadd.f32 %v229, %v309
    %v311 = vpop.f32.mrf.mxu0
    %v312 = vpop.f32.mrf.mxu0
    %v313 = vadd.f32 %v234, %v312
    %v314 = vpop.f32.mrf.mxu0
    %315 = vmatprep.mubr.bf16.mxu0 0
    %316 = vmatmul.mubr.bf16.gmra.mxu0 %v257
    %v317 = vpop.f32.mrf.mxu0
    %v318 = vadd.f32 %v239, %v317
    %v319 = vpop.f32.mrf.mxu0
    %v320 = vpop.f32.mrf.mxu0
    %v321 = vadd.f32 %v244, %v320
    %v322 = vpop.f32.mrf.mxu0
    %323 = vdwg.mxu0
    %v324 = vmax.f32 %v294, 0.0
    %v325 = vmax.f32 %v297, 0.0
    %v326 = vmax.f32 %v302, 0.0
    %v327 = vmax.f32 %v305, 0.0
    %v328 = vmax.f32 %v310, 0.0
    %v329 = vmax.f32 %v313, 0.0
    %v330 = vmax.f32 %v318, 0.0
    %v331 = vmax.f32 %v321, 0.0
    %v332 = vld [vmem:[#allocation5 + $0x100] sm:$0xff]
    %v333 = vld [vmem:[#allocation5 + $0x108] sm:$0xff]
    %v334 = vld [vmem:[#allocation5 + $0x110] sm:$0xff]
    %v335 = vld [vmem:[#allocation5 + $0x118] sm:$0xff]
    %v336 = vpack.c.bf16 %v333, %v332
    %v337 = vpack.c.bf16 %v335, %v334
    %v338 = vpack.c.bf16 %v325, %v324
    %v339 = vpack.c.bf16 %v327, %v326
    %v340 = vpack.c.bf16 %v329, %v328
    %v341 = vpack.c.bf16 %v331, %v330
    %v342 = vld [vmem:[#allocation5 + $0x120] sm:$0xff]
    %v343 = vld [vmem:[#allocation5 + $0x128] sm:$0xff]
    %v344 = vld [vmem:[#allocation5 + $0x130] sm:$0xff]
    %v345 = vld [vmem:[#allocation5 + $0x138] sm:$0xff]
    %347 = vset.pattern.permute.xlu0 0
    %348 = vperm.xlu0 %347, %v342
    %v349 = vpop.permute.xlu0 %348
    %352 = vset.pattern.permute.xlu0 0
    %353 = vperm.xlu0 %352, %v343
    %v354 = vpop.permute.xlu0 %353
    %357 = vset.pattern.permute.xlu0 0
    %358 = vperm.xlu0 %357, %v344
    %v359 = vpop.permute.xlu0 %358
    %362 = vset.pattern.permute.xlu0 0
    %363 = vperm.xlu0 %362, %v345
    %v364 = vpop.permute.xlu0 %363
    %v367 = vsel %vm246, %v336, 0
    %v370 = vsel %vm246, %v337, 0
    %372 = vmatprep.subr.bf16.mxu0 0
    %373 = vmatpush1.bf16.msra.mxu0 0
    %374 = vmatprep.subr.bf16.mxu0 0
    %375 = vmatpush1.bf16.msra.mxu0 0
    %376 = vmatprep.subr.bf16.mxu0 0
    %377 = vmatpush1.bf16.msra.mxu0 0
    %378 = vmatprep.subr.bf16.mxu0 0
    %379 = vmatpush1.bf16.msra.mxu0 0
    %380 = vmatprep.subr.bf16.mxu0 0
    %381 = vmatpush1.bf16.msra.mxu0 %v341
    %382 = vmatprep.subr.bf16.mxu0 0
    %383 = vmatpush1.bf16.msra.mxu0 %v340
    %384 = vmatprep.subr.bf16.mxu0 0
    %385 = vmatpush1.bf16.msra.mxu0 %v339
    %386 = vmatprep.subr.bf16.mxu0 0
    %387 = vmatpush1.bf16.msra.mxu0 %v338
    %388 = vmatprep.subr.bf16.mxu0 0
    %389 = vmatpush2.bf16.msra.mxu0 0
    %390 = vmatprep.subr.bf16.mxu0 0
    %391 = vmatpush2.bf16.msra.mxu0 0
    %392 = vmatprep.subr.bf16.mxu0 0
    %393 = vmatpush2.bf16.msra.mxu0 0
    %394 = vmatprep.subr.bf16.mxu0 0
    %395 = vmatpush2.bf16.msra.mxu0 0
    %396 = vmatprep.subr.bf16.mxu0 0
    %397 = vmatpush2.bf16.msra.mxu0 0
    %398 = vmatprep.subr.bf16.mxu0 0
    %399 = vmatpush2.bf16.msra.mxu0 0
    %400 = vmatprep.subr.bf16.mxu0 0
    %401 = vmatpush2.bf16.msra.mxu0 0
    %402 = vmatprep.subr.bf16.mxu0 0
    %403 = vmatpush2.bf16.msra.mxu0 0
    %404 = vmatprep.mubr.bf16.mxu0 0
    %405 = vmatmul.mubr.bf16.gmra.mxu0 %v367
    %v406 = vpop.f32.mrf.mxu0
    %v407 = vadd.f32 %v349, %v406
    %v408 = vpop.f32.mrf.mxu0
    %v409 = vpop.f32.mrf.mxu0
    %v410 = vadd.f32 %v354, %v409
    %v411 = vpop.f32.mrf.mxu0
    %412 = vmatprep.mubr.bf16.mxu0 0
    %413 = vmatmul.mubr.bf16.gmra.mxu0 %v370
    %v414 = vpop.f32.mrf.mxu0
    %v415 = vadd.f32 %v359, %v414
    %v416 = vpop.f32.mrf.mxu0
    %v417 = vpop.f32.mrf.mxu0
    %v418 = vadd.f32 %v364, %v417
    %v419 = vpop.f32.mrf.mxu0
    %420 = vdwg.mxu0
    %v421 = vmax.f32 %v407, 0.0
    %v422 = vmax.f32 %v410, 0.0
    %v423 = vmax.f32 %v415, 0.0
    %v424 = vmax.f32 %v418, 0.0
    %v425 = vld [vmem:[#allocation5 + $0x140] sm:$0x1]
    %v426 = vpack.c.bf16 %v425, %v425
    %v427 = vpack.c.bf16 %v422, %v421
    %v428 = vpack.c.bf16 %v424, %v423
    %v429 = vld [vmem:[#allocation5 + $0x148] sm:$0x1]
    %431 = vset.pattern.permute.xlu0 0
    %432 = vperm.xlu0 %431, %v429
    %v433 = vpop.permute.xlu0 %432
    %vm435 = vcmask 261120
    %v437 = vsel %vm435, %v426, 0
    %439 = vmatprep.subr.bf16.mxu0 0
    %440 = vmatpush1.bf16.msra.mxu0 0
    %441 = vmatprep.subr.bf16.mxu0 0
    %442 = vmatpush1.bf16.msra.mxu0 0
    %443 = vmatprep.subr.bf16.mxu0 0
    %444 = vmatpush1.bf16.msra.mxu0 0
    %445 = vmatprep.subr.bf16.mxu0 0
    %446 = vmatpush1.bf16.msra.mxu0 0
    %447 = vmatprep.subr.bf16.mxu0 0
    %448 = vmatpush1.bf16.msra.mxu0 0
    %449 = vmatprep.subr.bf16.mxu0 0
    %450 = vmatpush1.bf16.msra.mxu0 0
    %451 = vmatprep.subr.bf16.mxu0 0
    %452 = vmatpush1.bf16.msra.mxu0 %v428
    %453 = vmatprep.subr.bf16.mxu0 0
    %454 = vmatpush1.bf16.msra.mxu0 %v427
    %455 = vmatprep.subr.bf16.mxu0 0
    %456 = vmatpush2.bf16.msra.mxu0 0
    %457 = vmatprep.subr.bf16.mxu0 0
    %458 = vmatpush2.bf16.msra.mxu0 0
    %459 = vmatprep.subr.bf16.mxu0 0
    %460 = vmatpush2.bf16.msra.mxu0 0
    %461 = vmatprep.subr.bf16.mxu0 0
    %462 = vmatpush2.bf16.msra.mxu0 0
    %463 = vmatprep.subr.bf16.mxu0 0
    %464 = vmatpush2.bf16.msra.mxu0 0
    %465 = vmatprep.subr.bf16.mxu0 0
    %466 = vmatpush2.bf16.msra.mxu0 0
    %467 = vmatprep.subr.bf16.mxu0 0
    %468 = vmatpush2.bf16.msra.mxu0 0
    %469 = vmatprep.subr.bf16.mxu0 0
    %470 = vmatpush2.bf16.msra.mxu0 0
    %471 = vmatprep.mubr.bf16.mxu0 0
    %472 = vmatmul.mubr.bf16.gmra.mxu0 %v437
    %v473 = vpop.f32.mrf.mxu0
    %v474 = vadd.f32 %v433, %v473
    %v475 = vpop.f32.mrf.mxu0
    %v476 = vpop.f32.mrf.mxu0
    %v477 = vpop.f32.mrf.mxu0
    %478 = vdwg.mxu0
    %v479 = vsub.f32 0.0, %v474
    %v480 = vmul.f32 %v479, 1.442695
    %v481 = vpow.pop %v480
    %v482 = vadd.f32 %v481, 1.0
    %v483 = vrcp.pop %v482
    %vm484 = vcmask 57344
    %485 = vst.msk [vmem:[#allocation7] sm:$0x1] %vm484, %v483
    // Predicated region
    $region18: #{classification_forward.1} parent=1 // pred_check
      _
    $region19: #{classification_forward.1} parent=1 // pred_check_branch
      %487 = sbr.rel (0) target = $region21
    $region20: #{classification_forward.1} parent=1 // pred_region
      %s489 = ssub.s32 16, 16
      %490 = vsyncadd [#allocation4], %s489
      %s492 = sshll.u32 [#allocation7], 4
      %s493 = int_to_ptr.vmem [resolvable:$true] %s492
      %495 = dma.vmem_to_hbm [thread:$0]  %s493, 16, %s2, [#allocation4]
    $region21: #{classification_forward.1} parent=1 // pred_fallthru
      _
    // Predicated region
    $region22: #{classification_forward.1} parent=1 // pred_check
      _
    $region23: #{classification_forward.1} parent=1 // pred_check_branch
      %497 = sbr.rel (0) target = $region25
    $region24: #{classification_forward.1} parent=1 // pred_region
      %498 = dma.done [#allocation4], 16
    $region25: #{classification_forward.1} parent=1 // pred_fallthru
      _
    %499 = vsyncpa [#allocation3], 1
    %500 = vsyncpa [#allocation6], 1
    %501 = vsyncpa [#allocation4], 1

</llo_original>
